<compile_context>
chip_gen: v7x
topology: tpu7x:2x2x1
jax: 0.10.0
libtpu: 0.0.40
codegen_flags: <defaults>
</compile_context>

<pallas_src>
import jax
import jax.numpy as jnp
from jax.experimental import pallas as pl
from jax.experimental.pallas import tpu as pltpu


# ---------------------------------------------------------------------------
# Path 1: zero-copy identity (output aliases input HBM buffer).
# ---------------------------------------------------------------------------
def _identity_alias_kernel(x_ref, o_ref):
    # o_ref aliases x_ref's HBM buffer (input_output_aliases={0: 0}), so the
    # output already holds the input data. Nothing to move, nothing to compute.
    del x_ref, o_ref


@jax.jit
def identity(x):
    """Pallas identity: returns an array equal to x (same shape/dtype), zero-copy."""
    if x.size == 0:
        return x
    return pl.pallas_call(
        _identity_alias_kernel,
        out_shape=jax.ShapeDtypeStruct(x.shape, x.dtype),
        in_specs=[pl.BlockSpec(memory_space=pl.ANY)],
        out_specs=pl.BlockSpec(memory_space=pl.ANY),
        input_output_aliases={0: 0},
    )(x)


# ---------------------------------------------------------------------------
# Path 2: materialized copy (tiled, lane-dense, parallel grid).
# ---------------------------------------------------------------------------
def _copy_kernel(x_ref, o_ref):
    o_ref[...] = x_ref[...]


def _lane_dense_2d(x):
    """Reshape to 2D with a lane-dense (multiple-of-128) last dim when possible."""
    total = int(x.size)
    # Prefer a wide, 128-aligned last dim while keeping >= 8 rows.
    for c in (2048, 1024, 512, 256, 128):
        if total % c == 0 and (total // c) >= 8:
            return x.reshape(total // c, c)
    for c in (2048, 1024, 512, 256, 128):
        if total % c == 0:
            return x.reshape(total // c, c)
    # Fallback: correct but lane-sparse layout.
    if x.ndim == 0:
        return x.reshape(1, 1)
    if x.ndim == 1:
        return x.reshape(1, -1)
    return x.reshape(-1, x.shape[-1])


@jax.jit
def identity_copy(x):
    """Pallas identity that materializes a fresh copy of x (tiled HBM<->VMEM copy)."""
    if x.size == 0:
        return x

    x2 = _lane_dense_2d(x)
    R, C = x2.shape

    # Dtype-aware sublane multiple: 8 for 4-byte, 16 for 2-byte, 32 for 1-byte.
    itemsize = jnp.dtype(x2.dtype).itemsize
    sub_mult = max(8, 32 // max(int(itemsize), 1))

    # ~512x512 tiles: 1 MiB per f32 tile; double-buffered in+out ~4 MiB,
    # safe under all scoped VMEM defaults (16 MiB v5e, 32 MiB v6e/v7x).
    tr = R if R <= 512 else 512 - (512 % sub_mult)
    tc = C if C <= 512 else 512

    grid = (pl.cdiv(R, tr), pl.cdiv(C, tc))

    out2 = pl.pallas_call(
        _copy_kernel,
        out_shape=jax.ShapeDtypeStruct((R, C), x2.dtype),
        grid=grid,
        in_specs=[pl.BlockSpec((tr, tc), lambda i, j: (i, j))],
        out_specs=pl.BlockSpec((tr, tc), lambda i, j: (i, j)),
        compiler_params=pltpu.CompilerParams(
            dimension_semantics=("parallel", "parallel"),
        ),
    )(x2)

    return out2.reshape(x.shape)


if __name__ == "__main__":
    key = jax.random.PRNGKey(0)
    # Small NCHW input consistent with a typical conv-net feature map.
    x = jax.random.normal(key, (2, 4, 16, 16), dtype=jnp.float32)

    # Primary zero-copy path.
    y = identity(x)
    jax.block_until_ready(y)
    assert y.shape == x.shape, (y.shape, x.shape)
    assert y.dtype == x.dtype, (y.dtype, x.dtype)
    assert bool(jnp.all(y == x)), "aliased identity output mismatch"

    # Materialized-copy path.
    y2 = identity_copy(x)
    jax.block_until_ready(y2)
    assert y2.shape == x.shape, (y2.shape, x.shape)
    assert y2.dtype == x.dtype, (y2.dtype, x.dtype)
    assert bool(jnp.all(y2 == x)), "tiled copy identity output mismatch"

    print("KERNEL_OK")
</pallas_src>

<mosaic_0001>
module attributes {stable_mosaic.version = 11 : i64} {
  func.func @_identity_alias_kernel(%arg0: memref<2x4x16x16xf32, #tpu.memory_space<any>>, %arg1: memref<2x4x16x16xf32, #tpu.memory_space<any>>) attributes {dimension_semantics = [], scalar_prefetch = 0 : i64, scratch_operands = 0 : i64, tpu.core_type = #tpu.core_type<tc>} {
    return
  }
}

</mosaic_0001>

<llo_original>
// kernel: identity.1
$region0: #{identity.1}
  #allocation0 [shape = 'u32[]', space=smem, size = 0x4, offset = 0x4, fixed_abs, tag = 'smem constant byte address 0x4 - core index']
  #allocation1 [shape = 'u32[144,128]{1,0:T(1,128)}', space=vmem, size = 0x12000, scoped, tag = 'internal scratch']
  %s0 = inlined_call_operand.hbm [shape: f32[2,4,16,16], index: 0, kind: input, shape index: {}, may-alias: {0,1}]
  %s1 = inlined_call_operand.hbm [shape: f32[2,4,16,16], index: 1, kind: output, shape index: {}, may-alias: {0,1}]
  %s2 = sld [smem:[#allocation0]]
  $region2: #{identity.1} parent=0
    _
  %s4 = ssub.s32 1, %s2
  %s5 = scalar_select 0, %s4, %s2

</llo_original>
